<compile_context>
chip_gen: v6e
topology: v6e:2x2x1
jax: 0.10.0
libtpu: 0.0.40
codegen_flags: <defaults>
</compile_context>

<pallas_src>
import jax
import jax.numpy as jnp
from jax.experimental import pallas as pl
from jax.experimental.pallas import tpu as pltpu


_LANES = 512                 # lane width of the flat slab (multiple of 128 and of 4)
_MAX_ROWS_PER_BLOCK = 512    # 512 x 512 f32 = 1 MiB per block


def _roll_lanes(x, shift):
    """Circular shift along the last axis: out[..., j] = x[..., (j - shift) % C]."""
    c = x.shape[-1]
    return pltpu.roll(x, shift % c, axis=x.ndim - 1)


def _inv2x2_kernel(x_ref, o_ref):
    # x_ref: (R, C) tile of the flat row-major (B*4,) buffer.  Lane position
    # j % 4 selects the matrix entry within an aligned group: [a, b, c, d].
    x = x_ref[...].astype(jnp.float32)       # upcast (bf16-safe); no-op for f32
    shape = x.shape

    pos = jax.lax.broadcasted_iota(jnp.int32, shape, 1) & 3
    is0 = pos == 0
    is1 = pos == 1
    is2 = pos == 2
    neg = is1 | is2                          # entries that pick up a minus sign
    even = (pos & 1) == 0

    xp1 = _roll_lanes(x, -1)                 # x[j+1]
    xm1 = _roll_lanes(x, 1)                  # x[j-1]
    xp3 = _roll_lanes(x, -3)                 # x[j+3]
    xm3 = _roll_lanes(x, 3)                  # x[j-3]

    # Within-group reversal: [a, b, c, d] -> [d, c, b, a]
    rev = jnp.where(is0, xp3, jnp.where(is1, xp1, jnp.where(is2, xm1, xm3)))
    # Unsigned adjugate entries: [d, b, c, a]
    adj = jnp.where(neg, x, rev)

    # prod = [a*d, b*c, b*c, a*d]; adjacent-pair swap -> [b*c, a*d, a*d, b*c]
    prod = x * rev
    prod_sw = jnp.where(even, _roll_lanes(prod, -1), _roll_lanes(prod, 1))
    diff = prod - prod_sw                    # +det at pos {0,3}, -det at pos {1,2}
    det = jnp.where(neg, -diff, diff)        # a*d - b*c at every lane

    inv_det = pl.reciprocal(det)             # exact (approx could break 1e-5 rtol)
    out = jnp.where(neg, -adj, adj) * inv_det
    o_ref[...] = out.astype(o_ref.dtype)


def two_by_two_inverse(x):
    """Batched 2x2 inverse: x (B, 2, 2) -> (B, 2, 2)."""
    assert x.ndim == 3 and x.shape[1] == 2 and x.shape[2] == 2, "expected (B, 2, 2)"
    B = x.shape[0]
    dtype = x.dtype
    n = B * 4

    flat = x.reshape(n)                      # free: contiguous row-major view
    C = _LANES
    padded_n = pl.cdiv(n, C) * C
    pad = padded_n - n
    if pad:
        # Pad with identity matrices (det = 1) -> padded lanes stay finite.
        ident = jnp.tile(jnp.asarray([1, 0, 0, 1], dtype=dtype), pad // 4)
        flat = jnp.concatenate([flat, ident])

    rows = padded_n // C
    row_tile = min(_MAX_ROWS_PER_BLOCK, rows)
    grid = (pl.cdiv(rows, row_tile),)

    x2d = flat.reshape(rows, C)              # free: contiguous reshape

    out2d = pl.pallas_call(
        _inv2x2_kernel,
        out_shape=jax.ShapeDtypeStruct((rows, C), dtype),
        grid=grid,
        in_specs=[pl.BlockSpec((row_tile, C), lambda i: (i, 0))],
        out_specs=pl.BlockSpec((row_tile, C), lambda i: (i, 0)),
        compiler_params=pltpu.CompilerParams(
            dimension_semantics=("parallel",),
        ),
    )(x2d)

    out_flat = out2d.reshape(padded_n)
    if pad:
        out_flat = out_flat[:n]
    return out_flat.reshape(B, 2, 2)


def _reference(x):
    a = x[:, :1, :1]
    b = x[:, :1, 1:]
    c = x[:, 1:, :1]
    d = x[:, 1:, 1:]
    det = a * d - b * c
    flipped = jnp.concatenate(
        (jnp.concatenate((d, -b), axis=2),
         jnp.concatenate((-c, a), axis=2)),
        axis=1,
    )
    return 1.0 / det * flipped


if __name__ == "__main__":
    key = jax.random.PRNGKey(0)
    k1, k2 = jax.random.split(key)

    # Small shape consistent with the module: batch of 8 2x2 matrices.
    B = 8
    x = jax.random.normal(k1, (B, 2, 2), dtype=jnp.float32)
    # Keep matrices well-conditioned (avoid near-singular dets).
    x = x + 3.0 * jnp.eye(2, dtype=jnp.float32)[None, :, :]

    out = jax.block_until_ready(two_by_two_inverse(x))
    ref = _reference(x)
    assert out.shape == (B, 2, 2)
    assert jnp.allclose(out, ref, rtol=1e-5, atol=1e-5), "mismatch vs reference (small)"

    # Larger batch: exercises the multi-block grid, a partial final block and
    # the identity-padding path.
    B2 = 70_000
    x2 = jax.random.normal(k2, (B2, 2, 2), dtype=jnp.float32)
    x2 = x2 + 3.0 * jnp.eye(2, dtype=jnp.float32)[None, :, :]
    out2 = jax.block_until_ready(two_by_two_inverse(x2))
    ref2 = _reference(x2)
    assert jnp.allclose(out2, ref2, rtol=1e-5, atol=1e-5), "mismatch vs reference (large)"

    print("KERNEL_OK")
</pallas_src>

<mosaic_0001>
module attributes {stable_mosaic.version = 11 : i64} {
  func.func @_inv2x2_kernel(%arg0: i32, %arg1: memref<1x512xf32, #tpu.memory_space<vmem>>, %arg2: memref<1x512xf32, #tpu.memory_space<vmem>>) attributes {dimension_semantics = [#tpu.dimension_semantics<parallel>], iteration_bounds = array<i64: 1>, scalar_prefetch = 0 : i64, scratch_operands = 0 : i64, tpu.core_type = #tpu.core_type<tc>, window_params = [{transform_indices = @transform_0, window_bounds = array<i64: 1, 512>}, {transform_indices = @transform_1, window_bounds = array<i64: 1, 512>}]} {
    %c0 = arith.constant 0 : index
    %c0_0 = arith.constant 0 : index
    %0 = vector.load %arg1[%c0, %c0_0] : memref<1x512xf32, #tpu.memory_space<vmem>>, vector<1x512xf32>
    %1 = tpu.iota {dimensions = array<i32: 1>} : vector<1x512xi32>
    %c3_i32 = arith.constant 3 : i32
    %2 = vector.broadcast %c3_i32 : i32 to vector<1x512xi32>
    %3 = arith.andi %1, %2 : vector<1x512xi32>
    %c0_i32 = arith.constant 0 : i32
    %4 = vector.broadcast %c0_i32 : i32 to vector<1x512xi32>
    %5 = arith.cmpi eq, %3, %4 : vector<1x512xi32>
    %c1_i32 = arith.constant 1 : i32
    %6 = vector.broadcast %c1_i32 : i32 to vector<1x512xi32>
    %7 = arith.cmpi eq, %3, %6 : vector<1x512xi32>
    %c2_i32 = arith.constant 2 : i32
    %8 = vector.broadcast %c2_i32 : i32 to vector<1x512xi32>
    %9 = arith.cmpi eq, %3, %8 : vector<1x512xi32>
    %10 = arith.ori %7, %9 : vector<1x512xi1>
    %c1_i32_1 = arith.constant 1 : i32
    %11 = vector.broadcast %c1_i32_1 : i32 to vector<1x512xi32>
    %12 = arith.andi %3, %11 : vector<1x512xi32>
    %c0_i32_2 = arith.constant 0 : i32
    %13 = vector.broadcast %c0_i32_2 : i32 to vector<1x512xi32>
    %14 = arith.cmpi eq, %12, %13 : vector<1x512xi32>
    %c511_i32 = arith.constant 511 : i32
    %15 = tpu.dynamic_rotate %0 by %c511_i32 dim 1 : vector<1x512xf32>, i32 -> vector<1x512xf32>
    %c1_i32_3 = arith.constant 1 : i32
    %16 = tpu.dynamic_rotate %0 by %c1_i32_3 dim 1 : vector<1x512xf32>, i32 -> vector<1x512xf32>
    %c509_i32 = arith.constant 509 : i32
    %17 = tpu.dynamic_rotate %0 by %c509_i32 dim 1 : vector<1x512xf32>, i32 -> vector<1x512xf32>
    %c3_i32_4 = arith.constant 3 : i32
    %18 = tpu.dynamic_rotate %0 by %c3_i32_4 dim 1 : vector<1x512xf32>, i32 -> vector<1x512xf32>
    %19 = arith.select %9, %16, %18 : vector<1x512xi1>, vector<1x512xf32>
    %20 = arith.select %7, %15, %19 : vector<1x512xi1>, vector<1x512xf32>
    %21 = arith.select %5, %17, %20 : vector<1x512xi1>, vector<1x512xf32>
    %22 = arith.select %10, %0, %21 : vector<1x512xi1>, vector<1x512xf32>
    %23 = arith.mulf %0, %21 : vector<1x512xf32>
    %c511_i32_5 = arith.constant 511 : i32
    %24 = tpu.dynamic_rotate %23 by %c511_i32_5 dim 1 : vector<1x512xf32>, i32 -> vector<1x512xf32>
    %c1_i32_6 = arith.constant 1 : i32
    %25 = tpu.dynamic_rotate %23 by %c1_i32_6 dim 1 : vector<1x512xf32>, i32 -> vector<1x512xf32>
    %26 = arith.select %14, %24, %25 : vector<1x512xi1>, vector<1x512xf32>
    %27 = arith.subf %23, %26 : vector<1x512xf32>
    %cst = arith.constant 0.000000e+00 : f32
    %28 = vector.broadcast %cst : f32 to vector<1x512xf32>
    %29 = arith.subf %28, %27 : vector<1x512xf32>
    %30 = arith.select %10, %29, %27 : vector<1x512xi1>, vector<1x512xf32>
    %31 = tpu.reciprocal %30 : vector<1x512xf32> -> vector<1x512xf32>
    %cst_7 = arith.constant 0.000000e+00 : f32
    %32 = vector.broadcast %cst_7 : f32 to vector<1x512xf32>
    %33 = arith.subf %32, %22 : vector<1x512xf32>
    %34 = arith.select %10, %33, %22 : vector<1x512xi1>, vector<1x512xf32>
    %35 = arith.mulf %34, %31 : vector<1x512xf32>
    %c0_8 = arith.constant 0 : index
    %c0_9 = arith.constant 0 : index
    %36 = vector.load %arg2[%c0_8, %c0_9] : memref<1x512xf32, #tpu.memory_space<vmem>>, vector<1x512xf32>
    tpu.vector_store %arg2[%c0_8, %c0_9], %35 {strides = array<i32>} : memref<1x512xf32, #tpu.memory_space<vmem>>, vector<1x512xf32>,
    return
  }
  func.func @transform_0(%arg0: i32) -> (i32, i32) {
    %c0_i32 = arith.constant 0 : i32
    %c0_i32_0 = arith.constant 0 : i32
    return %arg0, %c0_i32 : i32, i32
  }
  func.func @transform_1(%arg0: i32) -> (i32, i32) {
    %c0_i32 = arith.constant 0 : i32
    %c0_i32_0 = arith.constant 0 : i32
    return %arg0, %c0_i32 : i32, i32
  }
}

</mosaic_0001>

<llo_original>
// kernel: tpu_custom_call.1
$region0: #{tpu_custom_call.1}
  #allocation0 [shape = 'u32[]', space=smem, size = 0x4, offset = 0x4, fixed_abs, tag = 'smem constant byte address 0x4 - core index']
  #allocation1 [shape = 'u32[144,128]{1,0:T(1,128)}', space=vmem, size = 0x12000, scoped, tag = 'internal scratch']
  %s0 = inlined_call_operand.hbm [shape: f32[1,512], index: 0, kind: input, shape index: {}]
  %s1 = inlined_call_operand.hbm [shape: f32[1,512], index: 1, kind: output, shape index: {}]
  %s2 = sld [smem:[#allocation0]]
  $region18: #{tpu_custom_call.1} parent=0
    _
  %s4 = ssub.s32 1, %s2
  %s5 = scalar_select 0, %s4, %s2
  $region1: #{tpu_custom_call.1} parent=0
    #allocation2 [shape = 'u8[2048]{0}', space=vmem, size = 0x800, scoped, tag = 'input window, operand 0, single buffered']
    #allocation3 [shape = 's32[1]{0}', space=sflag, size = 0x4, scoped, tag = 'scoped memory for tpu_custom_call.1']
    #allocation4 [shape = 's32[1]{0}', space=sflag, size = 0x4, scoped, tag = 'scoped memory for tpu_custom_call.1']
    #allocation5 [shape = 'u8[2048]{0}', space=vmem, size = 0x800, scoped, tag = 'output window, operand 0, single buffered']
    %6 = vsyncpa [#allocation3], 0
    %7 = vsyncpa [#allocation4], 0
    // Predicated region
    $region2: #{tpu_custom_call.1} parent=1 // pred_check
      _
    $region3: #{tpu_custom_call.1} parent=1 // pred_check_branch
      %9 = sbr.rel (0) target = $region5
    $region4: #{tpu_custom_call.1} parent=1 // pred_region
      %s11 = ssub.s32 64, 64
      %12 = vsyncadd [#allocation3], %s11
      %s14 = sshll.u32 [#allocation2], 4
      %s15 = int_to_ptr.vmem [resolvable:$true] %s14
      %17 = dma.hbm_to_vmem [thread:$0]  %s0, 64, %s15, [#allocation3]
    $region5: #{tpu_custom_call.1} parent=1 // pred_fallthru
      _
    // Predicated region
    $region6: #{tpu_custom_call.1} parent=1 // pred_check
      _
    $region7: #{tpu_custom_call.1} parent=1 // pred_check_branch
      %19 = sbr.rel (0) target = $region9
    $region8: #{tpu_custom_call.1} parent=1 // pred_region
      %20 = dma.done [#allocation3], 64
    $region9: #{tpu_custom_call.1} parent=1 // pred_fallthru
      _
    %v21 = vld [vmem:[#allocation2] sm:$0xf]
    %v22 = vlaneseq
    %v23 = vand.u32 %v22, 127
    %v24 = vadd.s32 %v23, 128
    %v25 = vadd.s32 %v23, 256
    %v26 = vadd.s32 %v23, 384
    %v27 = vand.u32 %v23, 3
    %v28 = vand.u32 %v24, 3
    %v29 = vand.u32 %v25, 3
    %v30 = vand.u32 %v26, 3
    %vm31 = vcmp.eq.s32.totalorder %v27, 0
    %vm32 = vcmp.eq.s32.totalorder %v28, 0
    %vm33 = vcmp.eq.s32.totalorder %v29, 0
    %vm34 = vcmp.eq.s32.totalorder %v30, 0
    %vm35 = vcmp.eq.s32.totalorder %v27, 1
    %vm36 = vcmp.eq.s32.totalorder %v28, 1
    %vm37 = vcmp.eq.s32.totalorder %v29, 1
    %vm38 = vcmp.eq.s32.totalorder %v30, 1
    %vm39 = vcmp.eq.s32.totalorder %v27, 2
    %vm40 = vcmp.eq.s32.totalorder %v28, 2
    %vm41 = vcmp.eq.s32.totalorder %v29, 2
    %vm42 = vcmp.eq.s32.totalorder %v30, 2
    %vm43 = vmor %vm35, %vm39
    %vm44 = vmor %vm36, %vm40
    %vm45 = vmor %vm37, %vm41
    %vm46 = vmor %vm38, %vm42
    %v47 = vand.u32 %v27, 1
    %v48 = vand.u32 %v28, 1
    %v49 = vand.u32 %v29, 1
    %v50 = vand.u32 %v30, 1
    %vm51 = vcmp.eq.s32.totalorder %v47, 0
    %vm52 = vcmp.eq.s32.totalorder %v48, 0
    %vm53 = vcmp.eq.s32.totalorder %v49, 0
    %vm54 = vcmp.eq.s32.totalorder %v50, 0
    %v56 = vlaneseq
    %v57 = vshrl.u32 %v56, 7
    %v58 = vsub.s32 0, %v57
    %v59 = vrot.slane %v21, %v58
    %v60 = vlaneseq
    %v61 = vshrl.u32 %v60, 7
    %v62 = vsub.s32 1, %v61
    %v63 = vrot.slane %v21, %v62
    %v64 = vlaneseq
    %v65 = vshrl.u32 %v64, 7
    %v66 = vsub.s32 2, %v65
    %v67 = vrot.slane %v21, %v66
    %v68 = vlaneseq
    %v69 = vshrl.u32 %v68, 7
    %v70 = vsub.s32 3, %v69
    %v71 = vrot.slane %v21, %v70
    %76 = vrot.lane.b32.xlu0 %v59, 127
    %v77 = vpop.permute.xlu0 %76
    %78 = vrot.lane.b32.xlu0 %v63, 127
    %v79 = vpop.permute.xlu0 %78
    %80 = vrot.lane.b32.xlu0 %v67, 127
    %v81 = vpop.permute.xlu0 %80
    %82 = vrot.lane.b32.xlu0 %v71, 127
    %v83 = vpop.permute.xlu0 %82
    %vm84 = vcmp.lt.s32.totalorder %v23, 127
    %v85 = vsel %vm84, %v81, %v83
    %v86 = vsel %vm84, %v79, %v81
    %v87 = vsel %vm84, %v77, %v79
    %v88 = vsel %vm84, %v83, %v77
    %89 = vrot.lane.b32.xlu0 %v59, 1
    %v90 = vpop.permute.xlu0 %89
    %91 = vrot.lane.b32.xlu0 %v63, 1
    %v92 = vpop.permute.xlu0 %91
    %93 = vrot.lane.b32.xlu0 %v67, 1
    %v94 = vpop.permute.xlu0 %93
    %95 = vrot.lane.b32.xlu0 %v71, 1
    %v96 = vpop.permute.xlu0 %95
    %vm97 = vcmp.lt.s32.totalorder %v23, 1
    %v98 = vsel %vm97, %v94, %v96
    %v99 = vsel %vm97, %v92, %v94
    %v100 = vsel %vm97, %v90, %v92
    %v101 = vsel %vm97, %v96, %v90
    %102 = vrot.lane.b32.xlu0 %v59, 125
    %v103 = vpop.permute.xlu0 %102
    %104 = vrot.lane.b32.xlu0 %v63, 125
    %v105 = vpop.permute.xlu0 %104
    %106 = vrot.lane.b32.xlu0 %v67, 125
    %v107 = vpop.permute.xlu0 %106
    %108 = vrot.lane.b32.xlu0 %v71, 125
    %v109 = vpop.permute.xlu0 %108
    %vm110 = vcmp.lt.s32.totalorder %v23, 125
    %v111 = vsel %vm110, %v107, %v109
    %v112 = vsel %vm110, %v105, %v107
    %v113 = vsel %vm110, %v103, %v105
    %v114 = vsel %vm110, %v109, %v103
    %115 = vrot.lane.b32.xlu0 %v59, 3
    %v116 = vpop.permute.xlu0 %115
    %117 = vrot.lane.b32.xlu0 %v63, 3
    %v118 = vpop.permute.xlu0 %117
    %119 = vrot.lane.b32.xlu0 %v67, 3
    %v120 = vpop.permute.xlu0 %119
    %121 = vrot.lane.b32.xlu0 %v71, 3
    %v122 = vpop.permute.xlu0 %121
    %vm123 = vcmp.lt.s32.totalorder %v23, 3
    %v124 = vsel %vm123, %v120, %v122
    %v125 = vsel %vm123, %v118, %v120
    %v126 = vsel %vm123, %v116, %v118
    %v127 = vsel %vm123, %v122, %v116
    %v128 = vsel %vm39, %v101, %v127
    %v129 = vsel %vm40, %v100, %v126
    %v130 = vsel %vm41, %v99, %v125
    %v131 = vsel %vm42, %v98, %v124
    %v132 = vsel %vm35, %v87, %v128
    %v133 = vsel %vm36, %v86, %v129
    %v134 = vsel %vm37, %v85, %v130
    %v135 = vsel %vm38, %v88, %v131
    %v136 = vsel %vm31, %v113, %v132
    %v137 = vsel %vm32, %v112, %v133
    %v138 = vsel %vm33, %v111, %v134
    %v139 = vsel %vm34, %v114, %v135
    %v140 = vsel %vm43, %v59, %v136
    %v141 = vsel %vm44, %v63, %v137
    %v142 = vsel %vm45, %v67, %v138
    %v143 = vsel %vm46, %v71, %v139
    %v148 = vcombine.low %v136, %v137
    %v149 = vcombine.low %v138, %v139
    %v151 = vunpack.c.l.s4 1966171168
    %v152 = vunpack.c.0.s8 %v151
    %v153 = vlaneseq
    %v154 = vshrl.u32 %v153, 7
    %v155 = vsub.s32 %v152, %v154
    %v156 = vrot.slane %v148, %v155
    %v158 = vunpack.c.l.s4 1966171168
    %v159 = vunpack.c.0.s8 %v158
    %v160 = vlaneseq
    %v161 = vshrl.u32 %v160, 7
    %v162 = vsub.s32 %v159, %v161
    %v163 = vrot.slane %v149, %v162
    %v164 = vcombine.low %v156, %v163
    %v166 = vunpack.c.l.s4 1966171168
    %v167 = vunpack.c.0.s8 %v166
    %v168 = vlaneseq
    %v169 = vshrl.u32 %v168, 7
    %v170 = vsub.s32 %v167, %v169
    %v171 = vrot.slane %v164, %v170
    %v173 = vmul.f32 %v21, %v171
    %v175 = vlaneseq
    %v176 = vshrl.u32 %v175, 7
    %v177 = vsub.s32 0, %v176
    %v178 = vrot.slane %v173, %v177
    %v179 = vlaneseq
    %v180 = vshrl.u32 %v179, 7
    %v181 = vsub.s32 1, %v180
    %v182 = vrot.slane %v173, %v181
    %v183 = vlaneseq
    %v184 = vshrl.u32 %v183, 7
    %v185 = vsub.s32 2, %v184
    %v186 = vrot.slane %v173, %v185
    %v187 = vlaneseq
    %v188 = vshrl.u32 %v187, 7
    %v189 = vsub.s32 3, %v188
    %v190 = vrot.slane %v173, %v189
    %195 = vrot.lane.b32.xlu0 %v178, 127
    %v196 = vpop.permute.xlu0 %195
    %197 = vrot.lane.b32.xlu0 %v182, 127
    %v198 = vpop.permute.xlu0 %197
    %199 = vrot.lane.b32.xlu0 %v186, 127
    %v200 = vpop.permute.xlu0 %199
    %201 = vrot.lane.b32.xlu0 %v190, 127
    %v202 = vpop.permute.xlu0 %201
    %v203 = vsel %vm84, %v200, %v202
    %v204 = vsel %vm84, %v198, %v200
    %v205 = vsel %vm84, %v196, %v198
    %v206 = vsel %vm84, %v202, %v196
    %207 = vrot.lane.b32.xlu0 %v178, 1
    %v208 = vpop.permute.xlu0 %207
    %209 = vrot.lane.b32.xlu0 %v182, 1
    %v210 = vpop.permute.xlu0 %209
    %211 = vrot.lane.b32.xlu0 %v186, 1
    %v212 = vpop.permute.xlu0 %211
    %213 = vrot.lane.b32.xlu0 %v190, 1
    %v214 = vpop.permute.xlu0 %213
    %v215 = vsel %vm97, %v212, %v214
    %v216 = vsel %vm97, %v210, %v212
    %v217 = vsel %vm97, %v208, %v210
    %v218 = vsel %vm97, %v214, %v208
    %v219 = vsel %vm51, %v205, %v218
    %v220 = vsel %vm52, %v204, %v217
    %v221 = vsel %vm53, %v203, %v216
    %v222 = vsel %vm54, %v206, %v215
    %v227 = vcombine.low %v219, %v220
    %v228 = vcombine.low %v221, %v222
    %v230 = vunpack.c.l.s4 1966171168
    %v231 = vunpack.c.0.s8 %v230
    %v232 = vlaneseq
    %v233 = vshrl.u32 %v232, 7
    %v234 = vsub.s32 %v231, %v233
    %v235 = vrot.slane %v227, %v234
    %v237 = vunpack.c.l.s4 1966171168
    %v238 = vunpack.c.0.s8 %v237
    %v239 = vlaneseq
    %v240 = vshrl.u32 %v239, 7
    %v241 = vsub.s32 %v238, %v240
    %v242 = vrot.slane %v228, %v241
    %v243 = vcombine.low %v235, %v242
    %v245 = vunpack.c.l.s4 1966171168
    %v246 = vunpack.c.0.s8 %v245
    %v247 = vlaneseq
    %v248 = vshrl.u32 %v247, 7
    %v249 = vsub.s32 %v246, %v248
    %v250 = vrot.slane %v243, %v249
    %v252 = vsub.f32 %v173, %v250
    %v253 = vsub.f32 0.0, %v252
    %v255 = vlaneseq
    %v256 = vshrl.u32 %v255, 7
    %v257 = vsub.s32 0, %v256
    %v258 = vrot.slane %v253, %v257
    %v259 = vlaneseq
    %v260 = vshrl.u32 %v259, 7
    %v261 = vsub.s32 1, %v260
    %v262 = vrot.slane %v253, %v261
    %v263 = vlaneseq
    %v264 = vshrl.u32 %v263, 7
    %v265 = vsub.s32 2, %v264
    %v266 = vrot.slane %v253, %v265
    %v267 = vlaneseq
    %v268 = vshrl.u32 %v267, 7
    %v269 = vsub.s32 3, %v268
    %v270 = vrot.slane %v253, %v269
    %v276 = vlaneseq
    %v277 = vshrl.u32 %v276, 7
    %v278 = vsub.s32 0, %v277
    %v279 = vrot.slane %v252, %v278
    %v280 = vlaneseq
    %v281 = vshrl.u32 %v280, 7
    %v282 = vsub.s32 1, %v281
    %v283 = vrot.slane %v252, %v282
    %v284 = vlaneseq
    %v285 = vshrl.u32 %v284, 7
    %v286 = vsub.s32 2, %v285
    %v287 = vrot.slane %v252, %v286
    %v288 = vlaneseq
    %v289 = vshrl.u32 %v288, 7
    %v290 = vsub.s32 3, %v289
    %v291 = vrot.slane %v252, %v290
    %v296 = vsel %vm43, %v258, %v279
    %v297 = vsel %vm44, %v262, %v283
    %v298 = vsel %vm45, %v266, %v287
    %v299 = vsel %vm46, %v270, %v291
    %v300 = vrcp.pop %v296
    %v301 = vrcp.pop %v297
    %v302 = vrcp.pop %v298
    %v303 = vrcp.pop %v299
    %v304 = vsub.f32 0.0, %v140
    %v305 = vsub.f32 0.0, %v141
    %v306 = vsub.f32 0.0, %v142
    %v307 = vsub.f32 0.0, %v143
    %v308 = vsel %vm43, %v304, %v136
    %v309 = vsel %vm44, %v305, %v137
    %v310 = vsel %vm45, %v306, %v138
    %v311 = vsel %vm46, %v307, %v139
    %v312 = vmul.f32 %v308, %v300
    %v313 = vmul.f32 %v309, %v301
    %v314 = vmul.f32 %v310, %v302
    %v315 = vmul.f32 %v311, %v303
    %v320 = vcombine.low %v312, %v313
    %v321 = vcombine.low %v314, %v315
    %v323 = vunpack.c.l.s4 1966171168
    %v324 = vunpack.c.0.s8 %v323
    %v325 = vlaneseq
    %v326 = vshrl.u32 %v325, 7
    %v327 = vsub.s32 %v324, %v326
    %v328 = vrot.slane %v320, %v327
    %v330 = vunpack.c.l.s4 1966171168
    %v331 = vunpack.c.0.s8 %v330
    %v332 = vlaneseq
    %v333 = vshrl.u32 %v332, 7
    %v334 = vsub.s32 %v331, %v333
    %v335 = vrot.slane %v321, %v334
    %v336 = vcombine.low %v328, %v335
    %v338 = vunpack.c.l.s4 1966171168
    %v339 = vunpack.c.0.s8 %v338
    %v340 = vlaneseq
    %v341 = vshrl.u32 %v340, 7
    %v342 = vsub.s32 %v339, %v341
    %v343 = vrot.slane %v336, %v342
    %v345 = vlaneseq
    %vm346 = vcmp.ge.s32.totalorder %v345, 0
    %vm347 = vcmp.lt.s32.totalorder %v345, 512
    %vm348 = vmand %vm346, %vm347
    %349 = vst.msk [vmem:[#allocation5] sm:$0xf] %vm348, %v343
    // Predicated region
    $region10: #{tpu_custom_call.1} parent=1 // pred_check
      _
    $region11: #{tpu_custom_call.1} parent=1 // pred_check_branch
      %351 = sbr.rel (0) target = $region13
    $region12: #{tpu_custom_call.1} parent=1 // pred_region
      %s353 = ssub.s32 64, 64
      %354 = vsyncadd [#allocation4], %s353
      %s356 = sshll.u32 [#allocation5], 4
      %s357 = int_to_ptr.vmem [resolvable:$true] %s356
      %359 = dma.vmem_to_hbm [thread:$0]  %s357, 64, %s1, [#allocation4]
    $region13: #{tpu_custom_call.1} parent=1 // pred_fallthru
      _
    // Predicated region
    $region14: #{tpu_custom_call.1} parent=1 // pred_check
      _
    $region15: #{tpu_custom_call.1} parent=1 // pred_check_branch
      %361 = sbr.rel (0) target = $region17
    $region16: #{tpu_custom_call.1} parent=1 // pred_region
      %362 = dma.done [#allocation4], 64
    $region17: #{tpu_custom_call.1} parent=1 // pred_fallthru
      _
    %363 = vsyncpa [#allocation3], 1
    %364 = vsyncpa [#allocation4], 1

</llo_original>
